<compile_context>
chip_gen: v7x
topology: tpu7x:2x2x1
jax: 0.10.0
libtpu: 0.0.40
codegen_flags: <defaults>
</compile_context>

<pallas_src>
import functools

import jax
import jax.numpy as jnp
from jax.experimental import pallas as pl
from jax.experimental.pallas import tpu as pltpu


_LANE = 128
_VMEM_LIMIT_BYTES = 32 * 1024 * 1024   # safe scoped-VMEM request on v5e/v6e/v7x
_FUSED_SLAB_BUDGET = 4 * 1024 * 1024   # max x-block bytes for the fused path
                                       # (~4x resident with in+out double-buffering)
_TILE_BUDGET = 2 * 1024 * 1024         # max x-block bytes for the tiled path


def _rowsum(v):
    """Sum over the last two axes (channel, spatial), keepdims.

    Lane reduce (axis=2) first, then sublane reduce (axis=1), written as two
    explicit reductions so they lower as plain XLU reduces.
    """
    return jnp.sum(jnp.sum(v, axis=2, keepdims=True), axis=1, keepdims=True)


# ---------------------------------------------------------------------------
# Fused path: whole (TB, C, HWp) slab per grid step (fits the VMEM budget).
# ---------------------------------------------------------------------------
def _layernorm_fused_kernel(x_ref, gamma_ref, beta_ref, o_ref, *, eps, count):
    x = x_ref[...].astype(jnp.float32)                  # (TB, C, HWp)

    # Single x*x pass; unbiased var from sum / sum-of-squares in f32.
    # Zero spatial padding does not perturb either sum; `count` is the true
    # (unpadded) element count.  (Cancellation is benign for normalized-scale
    # activations; accumulate in f32.)
    s = _rowsum(x)                                      # (TB, 1, 1)
    sq = _rowsum(x * x)                                 # (TB, 1, 1)
    mean = s * (1.0 / count)
    denom = max(count - 1.0, 1.0)                       # guard count == 1
    var = jnp.maximum((sq - count * mean * mean) / denom, 0.0)
    inv = 1.0 / (jnp.sqrt(var) + eps)                   # eps added to *std*

    # Fold normalization + affine into per-(sample, channel) scale/shift
    # (tiny (TB, C, 1) arrays) -> one fused multiply-add pass over the slab.
    gamma = gamma_ref[...].astype(jnp.float32)[None]    # (1, C, 1)
    beta = beta_ref[...].astype(jnp.float32)[None]      # (1, C, 1)
    a = inv * gamma                                     # (TB, C, 1)
    b = beta - mean * a                                 # (TB, C, 1)
    o_ref[...] = (x * a + b).astype(o_ref.dtype)


# ---------------------------------------------------------------------------
# Tiled two-pass path (large slabs): stats kernel + scale/shift kernel.
# ---------------------------------------------------------------------------
def _layernorm_stats_kernel(x_ref, sum_ref, sq_ref):
    """Accumulate per-sample sum / sum-of-squares over HW tiles."""
    t = pl.program_id(1)

    @pl.when(t == 0)
    def _():
        sum_ref[...] = jnp.zeros_like(sum_ref)
        sq_ref[...] = jnp.zeros_like(sq_ref)

    x = x_ref[...].astype(jnp.float32)                  # (1, C, THW)
    sum_ref[...] += _rowsum(x)                          # (1, 1, 1)
    sq_ref[...] += _rowsum(x * x)


def _layernorm_scale_shift_kernel(x_ref, a_ref, b_ref, o_ref):
    """out = x * a + b with per-(sample, channel) a, b."""
    x = x_ref[...].astype(jnp.float32)                  # (1, C, THW)
    a = a_ref[...].astype(jnp.float32)                  # (1, C, 1)
    b = b_ref[...].astype(jnp.float32)                  # (1, C, 1)
    o_ref[...] = (x * a + b).astype(o_ref.dtype)


# ---------------------------------------------------------------------------
# Wrapper
# ---------------------------------------------------------------------------
def _largest_divisor_leq(n, cap):
    cap = max(1, min(n, cap))
    for d in range(cap, 0, -1):
        if n % d == 0:
            return d
    return 1


def _pick_hw_tile(hwp, c, budget_bytes):
    """Largest multiple of 128 dividing hwp with c*tile*4 bytes <= budget."""
    m = hwp // _LANE
    best = _LANE
    for k in range(1, m + 1):
        if m % k == 0 and c * (k * _LANE) * 4 <= budget_bytes:
            best = k * _LANE
    return best


def layer_norm(x, gamma, beta, eps=1e-5, *, force_tiled=False,
               fused_budget_bytes=_FUSED_SLAB_BUDGET,
               tile_budget_bytes=_TILE_BUDGET):
    """x: (N, C, H, W). gamma/beta: (C,). Matches the PyTorch LayerNorm module."""
    n, c, h, w = x.shape
    hw = h * w
    hwp = ((hw + _LANE - 1) // _LANE) * _LANE           # lane-dense last dim
    count = float(c * hw)                               # true element count

    x2 = x.reshape(n, c, hw)
    if hwp != hw:
        x2 = jnp.pad(x2, ((0, 0), (0, 0), (0, hwp - hw)))

    gamma2 = gamma.reshape(c, 1).astype(jnp.float32)
    beta2 = beta.reshape(c, 1).astype(jnp.float32)

    per_sample_bytes = c * hwp * 4

    if (not force_tiled) and per_sample_bytes <= fused_budget_bytes:
        # ---- fused single-kernel path: fold TB batch elements per step ----
        tb = _largest_divisor_leq(n, fused_budget_bytes // per_sample_bytes)
        kernel = functools.partial(_layernorm_fused_kernel,
                                   eps=float(eps), count=count)
        out2 = pl.pallas_call(
            kernel,
            out_shape=jax.ShapeDtypeStruct((n, c, hwp), x.dtype),
            grid_spec=pltpu.PrefetchScalarGridSpec(
                num_scalar_prefetch=0,
                grid=(n // tb,),
                in_specs=[
                    pl.BlockSpec((tb, c, hwp), lambda i: (i, 0, 0)),
                    pl.BlockSpec((c, 1), lambda i: (0, 0)),
                    pl.BlockSpec((c, 1), lambda i: (0, 0)),
                ],
                out_specs=pl.BlockSpec((tb, c, hwp), lambda i: (i, 0, 0)),
            ),
            compiler_params=pltpu.CompilerParams(
                dimension_semantics=("parallel",),
                vmem_limit_bytes=_VMEM_LIMIT_BYTES,
            ),
        )(x2, gamma2, beta2)
    else:
        # ---- tiled two-pass path (slab too big for VMEM, e.g. on v7x) ----
        # TODO(synk): also tile over C if c * 128 * 4 bytes ever exceeds the
        # tile budget (not needed for typical image channel counts).
        thw = _pick_hw_tile(hwp, c, tile_budget_bytes)
        n_hw = hwp // thw

        sum_out, sq_out = pl.pallas_call(
            _layernorm_stats_kernel,
            out_shape=(jax.ShapeDtypeStruct((n, 1, 1), jnp.float32),
                       jax.ShapeDtypeStruct((n, 1, 1), jnp.float32)),
            grid_spec=pltpu.PrefetchScalarGridSpec(
                num_scalar_prefetch=0,
                grid=(n, n_hw),
                in_specs=[pl.BlockSpec((1, c, thw), lambda i, t: (i, 0, t))],
                out_specs=[pl.BlockSpec((1, 1, 1), lambda i, t: (i, 0, 0)),
                           pl.BlockSpec((1, 1, 1), lambda i, t: (i, 0, 0))],
            ),
            compiler_params=pltpu.CompilerParams(
                dimension_semantics=("parallel", "arbitrary"),
                vmem_limit_bytes=_VMEM_LIMIT_BYTES,
            ),
        )(x2)

        # Tiny per-sample / per-channel coefficient math in plain JAX.
        s = sum_out[:, 0, 0]
        sq = sq_out[:, 0, 0]
        mean = s / count
        denom = max(count - 1.0, 1.0)
        var = jnp.maximum((sq - count * mean * mean) / denom, 0.0)
        inv = 1.0 / (jnp.sqrt(var) + eps)
        a_nc = inv[:, None] * gamma.astype(jnp.float32)[None, :]      # (N, C)
        b_nc = beta.astype(jnp.float32)[None, :] - mean[:, None] * a_nc
        a3 = a_nc[:, :, None]                                         # (N, C, 1)
        b3 = b_nc[:, :, None]

        out2 = pl.pallas_call(
            _layernorm_scale_shift_kernel,
            out_shape=jax.ShapeDtypeStruct((n, c, hwp), x.dtype),
            grid_spec=pltpu.PrefetchScalarGridSpec(
                num_scalar_prefetch=0,
                grid=(n, n_hw),
                in_specs=[
                    pl.BlockSpec((1, c, thw), lambda i, t: (i, 0, t)),
                    pl.BlockSpec((1, c, 1), lambda i, t: (i, 0, 0)),
                    pl.BlockSpec((1, c, 1), lambda i, t: (i, 0, 0)),
                ],
                out_specs=pl.BlockSpec((1, c, thw), lambda i, t: (i, 0, t)),
            ),
            compiler_params=pltpu.CompilerParams(
                dimension_semantics=("parallel", "parallel"),
                vmem_limit_bytes=_VMEM_LIMIT_BYTES,
            ),
        )(x2, a3, b3)

    if hwp != hw:
        out2 = out2[:, :, :hw]
    return out2.reshape(n, c, h, w)


def layer_norm_reference(x, gamma, beta, eps=1e-5):
    """Pure-JAX reference matching the PyTorch module (unbiased std, eps on std)."""
    n = x.shape[0]
    xf = x.reshape(n, -1).astype(jnp.float32)
    m = xf.shape[1]
    mean = jnp.mean(xf, axis=1)
    var = jnp.sum((xf - mean[:, None]) ** 2, axis=1) / max(m - 1, 1)
    std = jnp.sqrt(var)
    shape = (n, 1, 1, 1)
    y = (x - mean.reshape(shape)) / (std.reshape(shape) + eps)
    return y * gamma.reshape(1, -1, 1, 1) + beta.reshape(1, -1, 1, 1)


if __name__ == "__main__":
    key = jax.random.PRNGKey(0)
    kx, kg = jax.random.split(key)
    N, C, H, W = 2, 4, 16, 16

    x = jax.random.normal(kx, (N, C, H, W), dtype=jnp.float32)
    # Parameter init as in the PyTorch module: gamma ~ U(0,1), beta = 0.
    gamma = jax.random.uniform(kg, (C,), dtype=jnp.float32)
    beta = jnp.zeros((C,), dtype=jnp.float32)

    ref = layer_norm_reference(x, gamma, beta)

    # Fused (batch-folded, whole-slab) path.
    out = jax.block_until_ready(layer_norm(x, gamma, beta))
    assert out.shape == (N, C, H, W)
    assert jnp.allclose(out, ref, atol=1e-4, rtol=1e-4), "fused path mismatch"

    # Tiled two-pass path, forced with a tiny tile budget (-> 2 HW tiles) to
    # exercise the accumulator scheme used for v7x-sized activations.
    out_t = jax.block_until_ready(
        layer_norm(x, gamma, beta, force_tiled=True, tile_budget_bytes=2048))
    assert jnp.allclose(out_t, ref, atol=1e-4, rtol=1e-4), "tiled path mismatch"

    print("KERNEL_OK")
</pallas_src>

<mosaic_0001>
module attributes {stable_mosaic.version = 11 : i64} {
  func.func @_layernorm_fused_kernel(%arg0: i32, %arg1: memref<2x4x256xf32, #tpu.memory_space<vmem>>, %arg2: memref<4x1xf32, #tpu.memory_space<vmem>>, %arg3: memref<4x1xf32, #tpu.memory_space<vmem>>, %arg4: memref<2x4x256xf32, #tpu.memory_space<vmem>>) attributes {dimension_semantics = [#tpu.dimension_semantics<parallel>], iteration_bounds = array<i64: 1>, scalar_prefetch = 0 : i64, scratch_operands = 0 : i64, tpu.core_type = #tpu.core_type<tc>, window_params = [{transform_indices = @transform_0, window_bounds = array<i64: 2, 4, 256>}, {pipeline_mode = #tpu.pipeline_mode<synchronous>, transform_indices = @transform_1, window_bounds = array<i64: 4, 1>}, {pipeline_mode = #tpu.pipeline_mode<synchronous>, transform_indices = @transform_2, window_bounds = array<i64: 4, 1>}, {transform_indices = @transform_3, window_bounds = array<i64: 2, 4, 256>}]} {
    %c0 = arith.constant 0 : index
    %c0_0 = arith.constant 0 : index
    %c0_1 = arith.constant 0 : index
    %0 = vector.load %arg1[%c0, %c0_0, %c0_1] : memref<2x4x256xf32, #tpu.memory_space<vmem>>, vector<2x4x256xf32>
    %cst = arith.constant dense<0.000000e+00> : vector<2x4xf32>
    %1 = vector.multi_reduction <add>, %0, %cst [2] : vector<2x4x256xf32> to vector<2x4xf32>
    %2 = vector.shape_cast %1 : vector<2x4xf32> to vector<2x4x1xf32>
    %cst_2 = arith.constant dense<0.000000e+00> : vector<2x1xf32>
    %3 = vector.multi_reduction <add>, %2, %cst_2 [1] : vector<2x4x1xf32> to vector<2x1xf32>
    %4 = vector.shape_cast %3 : vector<2x1xf32> to vector<2x1x1xf32>
    %5 = arith.mulf %0, %0 : vector<2x4x256xf32>
    %cst_3 = arith.constant dense<0.000000e+00> : vector<2x4xf32>
    %6 = vector.multi_reduction <add>, %5, %cst_3 [2] : vector<2x4x256xf32> to vector<2x4xf32>
    %7 = vector.shape_cast %6 : vector<2x4xf32> to vector<2x4x1xf32>
    %cst_4 = arith.constant dense<0.000000e+00> : vector<2x1xf32>
    %8 = vector.multi_reduction <add>, %7, %cst_4 [1] : vector<2x4x1xf32> to vector<2x1xf32>
    %9 = vector.shape_cast %8 : vector<2x1xf32> to vector<2x1x1xf32>
    %cst_5 = arith.constant 9.765625E-4 : f32
    %10 = vector.broadcast %cst_5 : f32 to vector<2x1x1xf32>
    %11 = arith.mulf %4, %10 : vector<2x1x1xf32>
    %cst_6 = arith.constant 1.024000e+03 : f32
    %12 = vector.broadcast %cst_6 : f32 to vector<2x1x1xf32>
    %13 = arith.mulf %12, %11 : vector<2x1x1xf32>
    %14 = arith.mulf %13, %11 : vector<2x1x1xf32>
    %15 = arith.subf %9, %14 : vector<2x1x1xf32>
    %cst_7 = arith.constant 1.023000e+03 : f32
    %16 = vector.broadcast %cst_7 : f32 to vector<2x1x1xf32>
    %17 = arith.divf %15, %16 : vector<2x1x1xf32>
    %cst_8 = arith.constant 0.000000e+00 : f32
    %18 = vector.broadcast %cst_8 : f32 to vector<2x1x1xf32>
    %19 = arith.maximumf %17, %18 : vector<2x1x1xf32>
    %20 = math.sqrt %19 : vector<2x1x1xf32>
    %cst_9 = arith.constant 9.99999974E-6 : f32
    %21 = vector.broadcast %cst_9 : f32 to vector<2x1x1xf32>
    %22 = arith.addf %20, %21 : vector<2x1x1xf32>
    %cst_10 = arith.constant 1.000000e+00 : f32
    %23 = vector.broadcast %cst_10 : f32 to vector<2x1x1xf32>
    %24 = arith.divf %23, %22 : vector<2x1x1xf32>
    %c0_11 = arith.constant 0 : index
    %c0_12 = arith.constant 0 : index
    %25 = vector.load %arg2[%c0_11, %c0_12] : memref<4x1xf32, #tpu.memory_space<vmem>>, vector<4x1xf32>
    %26 = vector.shape_cast %25 : vector<4x1xf32> to vector<1x4x1xf32>
    %c0_13 = arith.constant 0 : index
    %c0_14 = arith.constant 0 : index
    %27 = vector.load %arg3[%c0_13, %c0_14] : memref<4x1xf32, #tpu.memory_space<vmem>>, vector<4x1xf32>
    %28 = vector.shape_cast %27 : vector<4x1xf32> to vector<1x4x1xf32>
    %29 = vector.broadcast %24 : vector<2x1x1xf32> to vector<2x4x1xf32>
    %30 = vector.broadcast %26 : vector<1x4x1xf32> to vector<2x4x1xf32>
    %31 = arith.mulf %29, %30 : vector<2x4x1xf32>
    %32 = vector.broadcast %11 : vector<2x1x1xf32> to vector<2x4x1xf32>
    %33 = arith.mulf %32, %31 : vector<2x4x1xf32>
    %34 = vector.broadcast %28 : vector<1x4x1xf32> to vector<2x4x1xf32>
    %35 = arith.subf %34, %33 : vector<2x4x1xf32>
    %36 = vector.broadcast %31 : vector<2x4x1xf32> to vector<2x4x256xf32>
    %37 = arith.mulf %0, %36 : vector<2x4x256xf32>
    %38 = vector.broadcast %35 : vector<2x4x1xf32> to vector<2x4x256xf32>
    %39 = arith.addf %37, %38 : vector<2x4x256xf32>
    %c0_15 = arith.constant 0 : index
    %c0_16 = arith.constant 0 : index
    %c0_17 = arith.constant 0 : index
    %40 = vector.load %arg4[%c0_15, %c0_16, %c0_17] : memref<2x4x256xf32, #tpu.memory_space<vmem>>, vector<2x4x256xf32>
    tpu.vector_store %arg4[%c0_15, %c0_16, %c0_17], %39 {strides = array<i32>} : memref<2x4x256xf32, #tpu.memory_space<vmem>>, vector<2x4x256xf32>,
    return
  }
  func.func @transform_0(%arg0: i32) -> (i32, i32, i32) {
    %c0_i32 = arith.constant 0 : i32
    %c0_i32_0 = arith.constant 0 : i32
    %c0_i32_1 = arith.constant 0 : i32
    return %arg0, %c0_i32, %c0_i32_0 : i32, i32, i32
  }
  func.func @transform_1(%arg0: i32) -> (i32, i32) {
    %c0_i32 = arith.constant 0 : i32
    %c0_i32_0 = arith.constant 0 : i32
    %c0_i32_1 = arith.constant 0 : i32
    return %c0_i32, %c0_i32_0 : i32, i32
  }
  func.func @transform_2(%arg0: i32) -> (i32, i32) {
    %c0_i32 = arith.constant 0 : i32
    %c0_i32_0 = arith.constant 0 : i32
    %c0_i32_1 = arith.constant 0 : i32
    return %c0_i32, %c0_i32_0 : i32, i32
  }
  func.func @transform_3(%arg0: i32) -> (i32, i32, i32) {
    %c0_i32 = arith.constant 0 : i32
    %c0_i32_0 = arith.constant 0 : i32
    %c0_i32_1 = arith.constant 0 : i32
    return %arg0, %c0_i32, %c0_i32_0 : i32, i32, i32
  }
}

</mosaic_0001>

<llo_original>
// kernel: tpu_custom_call.1
$region0: #{tpu_custom_call.1}
  #allocation0 [shape = 'u32[]', space=smem, size = 0x4, offset = 0x4, fixed_abs, tag = 'smem constant byte address 0x4 - core index']
  #allocation1 [shape = 'u32[144,128]{1,0:T(1,128)}', space=vmem, size = 0x12000, scoped, tag = 'internal scratch']
  %s0 = inlined_call_operand.hbm [shape: f32[2,4,256], index: 0, kind: input, shape index: {}]
  %s1 = inlined_call_operand.vmem [shape: f32[4,1], index: 1, kind: input, shape index: {}]
  %s2 = inlined_call_operand.vmem [shape: f32[4,1], index: 2, kind: input, shape index: {}]
  %s3 = inlined_call_operand.hbm [shape: f32[2,4,256], index: 3, kind: output, shape index: {}]
  %s4 = sld [smem:[#allocation0]]
  $region26: #{tpu_custom_call.1} parent=0
    _
  %s6 = ssub.s32 1, %s4
  %s7 = scalar_select 0, %s6, %s4
  $region1: #{tpu_custom_call.1} parent=0
    #allocation2 [shape = 'u8[8192]{0}', space=vmem, size = 0x2000, scoped, tag = 'input window, operand 0, single buffered']
    #allocation3 [shape = 's32[1]{0}', space=sflag, size = 0x4, scoped, tag = 'scoped memory for tpu_custom_call.1']
    #allocation4 [shape = 's32[1]{0}', space=sflag, size = 0x4, scoped, tag = 'scoped memory for tpu_custom_call.1']
    #allocation5 [shape = 'u8[8192]{0}', space=vmem, size = 0x2000, scoped, tag = 'output window, operand 0, single buffered']
    %8 = vsyncpa [#allocation3], 0
    %9 = vsyncpa [#allocation4], 0
    // Predicated region
    $region2: #{tpu_custom_call.1} parent=1 // pred_check
      _
    $region3: #{tpu_custom_call.1} parent=1 // pred_check_branch
      %11 = sbr.rel (0) target = $region5
    $region4: #{tpu_custom_call.1} parent=1 // pred_region
      %s13 = ssub.s32 256, 256
      %14 = vsyncadd [#allocation3], %s13
      %s15 = sshll.u32 [#allocation2], 4
      %s16 = int_to_ptr.vmem [resolvable:$true] %s15
      %21 = dma.hbm_to_vmem [thread:$0]  %s0, 256, %s16, [#allocation3], 128, 128, 8
    $region5: #{tpu_custom_call.1} parent=1 // pred_fallthru
      _
    // Predicated region
    $region6: #{tpu_custom_call.1} parent=1 // pred_check
      _
    $region7: #{tpu_custom_call.1} parent=1 // pred_check_branch
      %23 = sbr.rel (0) target = $region9
    $region8: #{tpu_custom_call.1} parent=1 // pred_region
      _
    $region9: #{tpu_custom_call.1} parent=1 // pred_fallthru
      _
    // Predicated region
    $region10: #{tpu_custom_call.1} parent=1 // pred_check
      _
    $region11: #{tpu_custom_call.1} parent=1 // pred_check_branch
      %25 = sbr.rel (0) target = $region13
    $region12: #{tpu_custom_call.1} parent=1 // pred_region
      _
    $region13: #{tpu_custom_call.1} parent=1 // pred_fallthru
      _
    // Predicated region
    $region14: #{tpu_custom_call.1} parent=1 // pred_check
      _
    $region15: #{tpu_custom_call.1} parent=1 // pred_check_branch
      %27 = sbr.rel (0) target = $region17
    $region16: #{tpu_custom_call.1} parent=1 // pred_region
      %28 = dma.done [#allocation3], 256
    $region17: #{tpu_custom_call.1} parent=1 // pred_fallthru
      _
    %v29 = vld [vmem:[#allocation2] sm:$0xff]
    %v30 = vld [vmem:[#allocation2 + $0x8] sm:$0xff]
    %v33 = vcombine.high %v29, %v29
    %v34 = vcombine.high %v30, %v30
    %vm37 = vcmask 1043456
    %v38 = vsel %vm37, %v29, 0.0
    %v39 = vsel %vm37, %v33, 0.0
    %v40 = vadd.f32 %v38, %v39
    %41 = vadd.xlane.f32.xlu0 %v40
    %v42 = vpop.xlane.xlu0 %41
    %v43 = vsel %vm37, %v30, 0.0
    %v44 = vsel %vm37, %v34, 0.0
    %v45 = vadd.f32 %v43, %v44
    %46 = vadd.xlane.f32.xlu0 %v45
    %v47 = vpop.xlane.xlu0 %46
    %v48 = vsel %vm37, %v42, 0.0
    %v49 = vrot.slane %v48, 4
    %v50 = vadd.f32 %v48, %v49
    %v51 = vrot.slane %v50, 2
    %v52 = vadd.f32 %v50, %v51
    %v53 = vrot.slane %v52, 1
    %v54 = vadd.f32 %v52, %v53
    %v55 = vsel %vm37, %v47, 0.0
    %v56 = vrot.slane %v55, 4
    %v57 = vadd.f32 %v55, %v56
    %v58 = vrot.slane %v57, 2
    %v59 = vadd.f32 %v57, %v58
    %v60 = vrot.slane %v59, 1
    %v61 = vadd.f32 %v59, %v60
    %v62 = vmul.f32 %v29, %v29
    %v63 = vmul.f32 %v30, %v30
    %v66 = vcombine.high %v62, %v62
    %v67 = vcombine.high %v63, %v63
    %v70 = vsel %vm37, %v62, 0.0
    %v71 = vsel %vm37, %v66, 0.0
    %v72 = vadd.f32 %v70, %v71
    %73 = vadd.xlane.f32.xlu0 %v72
    %v74 = vpop.xlane.xlu0 %73
    %v75 = vsel %vm37, %v63, 0.0
    %v76 = vsel %vm37, %v67, 0.0
    %v77 = vadd.f32 %v75, %v76
    %78 = vadd.xlane.f32.xlu0 %v77
    %v79 = vpop.xlane.xlu0 %78
    %v80 = vsel %vm37, %v74, 0.0
    %v81 = vrot.slane %v80, 4
    %v82 = vadd.f32 %v80, %v81
    %v83 = vrot.slane %v82, 2
    %v84 = vadd.f32 %v82, %v83
    %v85 = vrot.slane %v84, 1
    %v86 = vadd.f32 %v84, %v85
    %v87 = vsel %vm37, %v79, 0.0
    %v88 = vrot.slane %v87, 4
    %v89 = vadd.f32 %v87, %v88
    %v90 = vrot.slane %v89, 2
    %v91 = vadd.f32 %v89, %v90
    %v92 = vrot.slane %v91, 1
    %v93 = vadd.f32 %v91, %v92
    %v94 = vmul.f32 %v54, 0.0009765625
    %v95 = vmul.f32 %v61, 0.0009765625
    %v96 = vmul.f32 %v94, 1024.0
    %v97 = vmul.f32 %v95, 1024.0
    %v98 = vmul.f32 %v96, %v94
    %v99 = vmul.f32 %v97, %v95
    %v100 = vsub.f32 %v86, %v98
    %v101 = vsub.f32 %v93, %v99
    %v102 = vrcp.pop 1023.0
    %v103 = vmul.f32 %v100, %v102
    %v104 = vmul.f32 %v101, %v102
    %v105 = vmax.f32 %v103, 0.0
    %v106 = vmax.f32 %v104, 0.0
    %v107 = vrsqrt.pop %v105
    %v108 = vmul.f32 %v105, %v107
    %vm109 = vcmp.eq.f32.partialorder %v105, inf
    %v110 = vsel %vm109, %v105, %v108
    %vm111 = vcmp.eq.f32.partialorder %v105, 0.0
    %v112 = vand.u32 %v105, 2147483648
    %v113 = vsel %vm111, %v112, %v110
    %v114 = vrsqrt.pop %v106
    %v115 = vmul.f32 %v106, %v114
    %vm116 = vcmp.eq.f32.partialorder %v106, inf
    %v117 = vsel %vm116, %v106, %v115
    %vm118 = vcmp.eq.f32.partialorder %v106, 0.0
    %v119 = vand.u32 %v106, 2147483648
    %v120 = vsel %vm118, %v119, %v117
    %v121 = vadd.f32 %v113, 1e-05
    %v122 = vadd.f32 %v120, 1e-05
    %v123 = vrcp.pop %v121
    %v124 = vmul.f32 1.0, %v123
    %v125 = vrcp.pop %v122
    %v126 = vmul.f32 1.0, %v125
    %v127 = vld [vmem:[%s1] sm:$0xf]
    %v128 = vld [vmem:[%s2] sm:$0xf]
    %v129 = vmul.f32 %v124, %v127
    %v130 = vmul.f32 %v126, %v127
    %v131 = vmul.f32 %v94, %v129
    %v132 = vmul.f32 %v95, %v130
    %v133 = vsub.f32 %v128, %v131
    %v134 = vsub.f32 %v128, %v132
    %136 = vset.pattern.permute.xlu0 0
    %137 = vperm.xlu0 %136, %v129
    %v138 = vpop.permute.xlu0 %137
    %140 = vset.pattern.permute.xlu0 0
    %141 = vperm.xlu0 %140, %v130
    %v142 = vpop.permute.xlu0 %141
    %v144 = vunpack.c.l.s4 839922192
    %v145 = vunpack.c.0.s8 %v144
    %v146 = vlaneseq
    %v147 = vshrl.u32 %v146, 7
    %v148 = vsub.s32 %v145, %v147
    %v149 = vrot.slane %v138, %v148
    %v151 = vunpack.c.l.s4 839922192
    %v152 = vunpack.c.0.s8 %v151
    %v153 = vlaneseq
    %v154 = vshrl.u32 %v153, 7
    %v155 = vsub.s32 %v152, %v154
    %v156 = vrot.slane %v142, %v155
    %v159 = vmul.f32 %v29, %v149
    %v160 = vmul.f32 %v30, %v156
    %162 = vset.pattern.permute.xlu0 0
    %163 = vperm.xlu0 %162, %v133
    %v164 = vpop.permute.xlu0 %163
    %166 = vset.pattern.permute.xlu0 0
    %167 = vperm.xlu0 %166, %v134
    %v168 = vpop.permute.xlu0 %167
    %v170 = vunpack.c.l.s4 839922192
    %v171 = vunpack.c.0.s8 %v170
    %v172 = vlaneseq
    %v173 = vshrl.u32 %v172, 7
    %v174 = vsub.s32 %v171, %v173
    %v175 = vrot.slane %v164, %v174
    %v177 = vunpack.c.l.s4 839922192
    %v178 = vunpack.c.0.s8 %v177
    %v179 = vlaneseq
    %v180 = vshrl.u32 %v179, 7
    %v181 = vsub.s32 %v178, %v180
    %v182 = vrot.slane %v168, %v181
    %v185 = vadd.f32 %v159, %v175
    %v186 = vadd.f32 %v160, %v182
    %187 = vst [vmem:[#allocation5] sm:$0xff] %v185
    %188 = vst [vmem:[#allocation5 + $0x8] sm:$0xff] %v186
    // Predicated region
    $region18: #{tpu_custom_call.1} parent=1 // pred_check
      _
    $region19: #{tpu_custom_call.1} parent=1 // pred_check_branch
      %190 = sbr.rel (0) target = $region21
    $region20: #{tpu_custom_call.1} parent=1 // pred_region
      %s192 = ssub.s32 256, 256
      %193 = vsyncadd [#allocation4], %s192
      %s194 = sshll.u32 [#allocation5], 4
      %s195 = int_to_ptr.vmem [resolvable:$true] %s194
      %200 = dma.vmem_to_hbm [thread:$0]  %s195, 256, %s3, [#allocation4], 128, 128, 8
    $region21: #{tpu_custom_call.1} parent=1 // pred_fallthru
      _
    // Predicated region
    $region22: #{tpu_custom_call.1} parent=1 // pred_check
      _
    $region23: #{tpu_custom_call.1} parent=1 // pred_check_branch
      %202 = sbr.rel (0) target = $region25
    $region24: #{tpu_custom_call.1} parent=1 // pred_region
      %203 = dma.done [#allocation4], 256
    $region25: #{tpu_custom_call.1} parent=1 // pred_fallthru
      _
    %204 = vsyncpa [#allocation3], 1
    %205 = vsyncpa [#allocation4], 1

</llo_original>
